<compile_context>
chip_gen: v7x
topology: tpu7x:2x2x1
jax: 0.10.0
libtpu: 0.0.40
codegen_flags: <defaults>
</compile_context>

<pallas_src>
import jax
import jax.numpy as jnp
from jax.experimental import pallas as pl
from jax.experimental.pallas import tpu as pltpu

HIDDEN = 128
LANE = 128
DEFAULT_TILE_B = 4096  # hidden tile = 128*4096*4B = 2 MiB; safe on v5e/v6e/v7x


def value_net_kernel(xa_ref, w1a_ref, w2_ref, b2_ref, out_ref):
    # xa_ref : [S+1, TILE_B]   (batch on lanes; last row is all-ones "bias lane")
    # w1a_ref: [128, S+1]      ([W1 | b1], PyTorch out_features x (in_features+1))
    # w2_ref : [1, 128]        (W2 as a row)
    # b2_ref : [1, 1]          (SMEM scalar)
    # out_ref: [1, TILE_B]     (lane-dense value row)

    # Layer 1 (+ bias, folded into K): MXU matmul, ReLU on the VPU.
    hT = jnp.maximum(
        jnp.dot(w1a_ref[...], xa_ref[...], preferred_element_type=jnp.float32),
        0.0,
    )  # [128, TILE_B]

    # Layer 2: M=1 MXU matmul keeps the multiply+128-way reduce off the VPU and
    # the output lane-dense.
    v = jnp.dot(w2_ref[...], hT, preferred_element_type=jnp.float32) + b2_ref[0, 0]
    out_ref[...] = v.astype(out_ref.dtype)  # [1, TILE_B]


def value_network_forward(state, w1, b1, w2, b2, *, tile_b=DEFAULT_TILE_B):
    """state: [B, S] float32 -> state_value: [B, 1] float32.

    Weights are stored as w1:[S,128], b1:[128], w2:[128,1], b2:[1]
    (w1 = W1.T, w2 = W2.T relative to PyTorch's [out, in] layout).
    """
    B, S = state.shape

    # Lane-align and tile the batch dimension.
    b_pad = ((B + LANE - 1) // LANE) * LANE
    tile_b = min(tile_b, b_pad)
    b_pad = ((b_pad + tile_b - 1) // tile_b) * tile_b
    num_tiles = b_pad // tile_b

    # Augmented, transposed, zero-padded input: [S+1, B_pad], batch on lanes.
    #   rows 0..S-1 = state.T, row S = 1.0 so the layer-1 bias rides the matmul.
    xa = jnp.zeros((S + 1, b_pad), jnp.float32)
    xa = xa.at[:S, :B].set(state.T.astype(jnp.float32))
    xa = xa.at[S, :].set(1.0)

    w1a = jnp.concatenate(
        [w1.T.astype(jnp.float32), b1.reshape(HIDDEN, 1).astype(jnp.float32)],
        axis=1,
    )                                               # [128, S+1]
    w2_row = w2.reshape(1, HIDDEN).astype(jnp.float32)   # [1, 128]
    b2_smem = b2.reshape(1, 1).astype(jnp.float32)        # SMEM scalar

    out_row = pl.pallas_call(
        value_net_kernel,
        out_shape=jax.ShapeDtypeStruct((1, b_pad), jnp.float32),
        grid=(num_tiles,),
        in_specs=[
            pl.BlockSpec((S + 1, tile_b), lambda i: (0, i)),     # x.T tile (pipelined)
            pl.BlockSpec((HIDDEN, S + 1), lambda i: (0, 0)),     # [W1|b1] resident
            pl.BlockSpec((1, HIDDEN), lambda i: (0, 0)),         # w2 row resident
            pl.BlockSpec(memory_space=pltpu.MemorySpace.SMEM),   # b2 scalar
        ],
        out_specs=pl.BlockSpec((1, tile_b), lambda i: (0, i)),   # lane-dense output
        compiler_params=pltpu.CompilerParams(
            dimension_semantics=("parallel",),
            vmem_limit_bytes=32 * 1024 * 1024,
        ),
    )(xa, w1a, w2_row, b2_smem)

    return out_row[0, :B].reshape(B, 1)


def init_params(key, state_space):
    """Deterministic init mimicking PyTorch's default Linear init
    (uniform +/- 1/sqrt(fan_in))."""
    k1, k2, k3, k4 = jax.random.split(key, 4)
    bound1 = 1.0 / jnp.sqrt(jnp.float32(state_space))
    bound2 = 1.0 / jnp.sqrt(jnp.float32(HIDDEN))
    w1 = jax.random.uniform(k1, (state_space, HIDDEN), jnp.float32, -bound1, bound1)
    b1 = jax.random.uniform(k2, (HIDDEN,), jnp.float32, -bound1, bound1)
    w2 = jax.random.uniform(k3, (HIDDEN, 1), jnp.float32, -bound2, bound2)
    b2 = jax.random.uniform(k4, (1,), jnp.float32, -bound2, bound2)
    return w1, b1, w2, b2


if __name__ == "__main__":
    # state is (x, y) -> state_space = 2; small batch of states.
    batch, state_space = 8, 2
    key = jax.random.PRNGKey(0)
    k_params, k_state = jax.random.split(key)

    w1, b1, w2, b2 = init_params(k_params, state_space)
    state = jax.random.normal(k_state, (batch, state_space), jnp.float32)

    value = value_network_forward(state, w1, b1, w2, b2)
    value = jax.block_until_ready(value)

    # Pure-JAX reference check of forward-pass semantics.
    ref = jnp.maximum(state @ w1 + b1, 0.0) @ w2 + b2
    assert value.shape == (batch, 1)
    assert jnp.allclose(value, ref, atol=1e-4, rtol=1e-4)

    print("KERNEL_OK")
</pallas_src>

<mosaic_0001>
module attributes {stable_mosaic.version = 11 : i64} {
  func.func @value_net_kernel(%arg0: i32, %arg1: memref<3x128xf32, #tpu.memory_space<vmem>>, %arg2: memref<128x3xf32, #tpu.memory_space<vmem>>, %arg3: memref<1x128xf32, #tpu.memory_space<vmem>>, %arg4: memref<1x1xf32, #tpu.memory_space<smem>>, %arg5: memref<1x128xf32, #tpu.memory_space<vmem>>) attributes {dimension_semantics = [#tpu.dimension_semantics<parallel>], iteration_bounds = array<i64: 1>, scalar_prefetch = 0 : i64, scratch_operands = 0 : i64, tpu.core_type = #tpu.core_type<tc>, window_params = [{transform_indices = @transform_0, window_bounds = array<i64: 3, 128>}, {pipeline_mode = #tpu.pipeline_mode<synchronous>, transform_indices = @transform_1, window_bounds = array<i64: 128, 3>}, {pipeline_mode = #tpu.pipeline_mode<synchronous>, transform_indices = @transform_2, window_bounds = array<i64: 1, 128>}, {transform_indices = @transform_3, window_bounds = array<i64: 1, 1>}, {transform_indices = @transform_4, window_bounds = array<i64: 1, 128>}]} {
    %c0 = arith.constant 0 : index
    %c0_0 = arith.constant 0 : index
    %0 = vector.load %arg2[%c0, %c0_0] : memref<128x3xf32, #tpu.memory_space<vmem>>, vector<128x3xf32>
    %c0_1 = arith.constant 0 : index
    %c0_2 = arith.constant 0 : index
    %1 = vector.load %arg1[%c0_1, %c0_2] : memref<3x128xf32, #tpu.memory_space<vmem>>, vector<3x128xf32>
    %cst = arith.constant dense<0.000000e+00> : vector<128x128xf32>
    %2 = tpu.matmul %0, %1, %cst {dimension_numbers = #tpu.dot_dimension_numbers<[1], [0], [0], [1], [0, 0, 1, 1], [], []>} : vector<128x3xf32>, vector<3x128xf32>, vector<128x128xf32> -> vector<128x128xf32>
    %cst_3 = arith.constant 0.000000e+00 : f32
    %3 = vector.broadcast %cst_3 : f32 to vector<128x128xf32>
    %4 = arith.maximumf %2, %3 : vector<128x128xf32>
    %c0_4 = arith.constant 0 : index
    %c0_5 = arith.constant 0 : index
    %5 = vector.load %arg3[%c0_4, %c0_5] : memref<1x128xf32, #tpu.memory_space<vmem>>, vector<1x128xf32>
    %cst_6 = arith.constant dense<0.000000e+00> : vector<1x128xf32>
    %6 = tpu.matmul %5, %4, %cst_6 {dimension_numbers = #tpu.dot_dimension_numbers<[1], [0], [0], [1], [0, 0, 1, 1], [], []>} : vector<1x128xf32>, vector<128x128xf32>, vector<1x128xf32> -> vector<1x128xf32>
    %c0_7 = arith.constant 0 : index
    %c0_8 = arith.constant 0 : index
    %7 = memref.load %arg4[%c0_7, %c0_8] : memref<1x1xf32, #tpu.memory_space<smem>>
    %8 = vector.broadcast %7 : f32 to vector<1x128xf32>
    %9 = arith.addf %6, %8 : vector<1x128xf32>
    %c0_9 = arith.constant 0 : index
    %c0_10 = arith.constant 0 : index
    %10 = vector.load %arg5[%c0_9, %c0_10] : memref<1x128xf32, #tpu.memory_space<vmem>>, vector<1x128xf32>
    tpu.vector_store %arg5[%c0_9, %c0_10], %9 {strides = array<i32>} : memref<1x128xf32, #tpu.memory_space<vmem>>, vector<1x128xf32>,
    return
  }
  func.func @transform_0(%arg0: i32) -> (i32, i32) {
    %c0_i32 = arith.constant 0 : i32
    %c0_i32_0 = arith.constant 0 : i32
    return %c0_i32, %arg0 : i32, i32
  }
  func.func @transform_1(%arg0: i32) -> (i32, i32) {
    %c0_i32 = arith.constant 0 : i32
    %c0_i32_0 = arith.constant 0 : i32
    %c0_i32_1 = arith.constant 0 : i32
    return %c0_i32, %c0_i32_0 : i32, i32
  }
  func.func @transform_2(%arg0: i32) -> (i32, i32) {
    %c0_i32 = arith.constant 0 : i32
    %c0_i32_0 = arith.constant 0 : i32
    %c0_i32_1 = arith.constant 0 : i32
    return %c0_i32, %c0_i32_0 : i32, i32
  }
  func.func @transform_3(%arg0: i32) -> (i32, i32) {
    %c0_i32 = arith.constant 0 : i32
    %c0_i32_0 = arith.constant 0 : i32
    %c0_i32_1 = arith.constant 0 : i32
    return %c0_i32, %c0_i32_0 : i32, i32
  }
  func.func @transform_4(%arg0: i32) -> (i32, i32) {
    %c0_i32 = arith.constant 0 : i32
    %c0_i32_0 = arith.constant 0 : i32
    return %c0_i32, %arg0 : i32, i32
  }
}

</mosaic_0001>

<llo_original>
// kernel: tpu_custom_call.1
$region0: #{tpu_custom_call.1}
  #allocation0 [shape = 'u32[]', space=smem, size = 0x4, offset = 0x4, fixed_abs, tag = 'smem constant byte address 0x4 - core index']
  #allocation1 [shape = 'u32[144,128]{1,0:T(1,128)}', space=vmem, size = 0x12000, scoped, tag = 'internal scratch']
  #allocation2 [shape = 'f32[1,1]{1,0:T(1,128)S(6)}', space=smem, size = 0x200, scoped, tag = 'scoped memory for tpu_custom_call.1']
  %s0 = inlined_call_operand.vmem [shape: f32[3,128], index: 0, kind: input, shape index: {}]
  %s1 = inlined_call_operand.vmem [shape: f32[128,3], index: 1, kind: input, shape index: {}]
  %s2 = inlined_call_operand.vmem [shape: f32[1,128], index: 2, kind: input, shape index: {}]
  %s3 = inlined_call_operand.<no memory space> [shape: f32[1,1], index: 3, kind: input, shape index: {}]
  %s4 = inlined_call_operand.hbm [shape: f32[1,128], index: 4, kind: output, shape index: {}]
  %s5 = sld [smem:[#allocation0]]
  $region26: #{tpu_custom_call.1} parent=0
    _
  %s7 = ssub.s32 1, %s5
  %s8 = scalar_select 0, %s7, %s5
  %9 = sst [smem:[#allocation2]] %s3
  $region1: #{tpu_custom_call.1} parent=0
    #allocation3 [shape = 'u8[512]{0}', space=vmem, size = 0x400, scoped, tag = 'output window, operand 0, single buffered']
    #allocation4 [shape = 's32[1]{0}', space=sflag, size = 0x4, scoped, tag = 'scoped memory for tpu_custom_call.1']
    %10 = vsyncpa [#allocation4], 0
    // Predicated region
    $region2: #{tpu_custom_call.1} parent=1 // pred_check
      _
    $region3: #{tpu_custom_call.1} parent=1 // pred_check_branch
      %12 = sbr.rel (0) target = $region5
    $region4: #{tpu_custom_call.1} parent=1 // pred_region
      _
    $region5: #{tpu_custom_call.1} parent=1 // pred_fallthru
      _
    // Predicated region
    $region6: #{tpu_custom_call.1} parent=1 // pred_check
      _
    $region7: #{tpu_custom_call.1} parent=1 // pred_check_branch
      %14 = sbr.rel (0) target = $region9
    $region8: #{tpu_custom_call.1} parent=1 // pred_region
      _
    $region9: #{tpu_custom_call.1} parent=1 // pred_fallthru
      _
    // Predicated region
    $region10: #{tpu_custom_call.1} parent=1 // pred_check
      _
    $region11: #{tpu_custom_call.1} parent=1 // pred_check_branch
      %16 = sbr.rel (0) target = $region13
    $region12: #{tpu_custom_call.1} parent=1 // pred_region
      _
    $region13: #{tpu_custom_call.1} parent=1 // pred_fallthru
      _
    // Predicated region
    $region14: #{tpu_custom_call.1} parent=1 // pred_check
      _
    $region15: #{tpu_custom_call.1} parent=1 // pred_check_branch
      %18 = sbr.rel (0) target = $region17
    $region16: #{tpu_custom_call.1} parent=1 // pred_region
      _
    $region17: #{tpu_custom_call.1} parent=1 // pred_fallthru
      _
    %v19 = vld [vmem:[%s1] sm:$0xff]
    %v20 = vld [vmem:[%s1 + $0x8] sm:$0xff]
    %v21 = vld [vmem:[%s1 + $0x10] sm:$0xff]
    %v22 = vld [vmem:[%s1 + $0x18] sm:$0xff]
    %v23 = vld [vmem:[%s1 + $0x20] sm:$0xff]
    %v24 = vld [vmem:[%s1 + $0x28] sm:$0xff]
    %v25 = vld [vmem:[%s1 + $0x30] sm:$0xff]
    %v26 = vld [vmem:[%s1 + $0x38] sm:$0xff]
    %v27 = vld [vmem:[%s1 + $0x40] sm:$0xff]
    %v28 = vld [vmem:[%s1 + $0x48] sm:$0xff]
    %v29 = vld [vmem:[%s1 + $0x50] sm:$0xff]
    %v30 = vld [vmem:[%s1 + $0x58] sm:$0xff]
    %v31 = vld [vmem:[%s1 + $0x60] sm:$0xff]
    %v32 = vld [vmem:[%s1 + $0x68] sm:$0xff]
    %v33 = vld [vmem:[%s1 + $0x70] sm:$0xff]
    %v34 = vld [vmem:[%s1 + $0x78] sm:$0xff]
    %v35 = vld [vmem:[%s0] sm:$0x7]
    %vm36 = vcmask 23552
    %v38 = vsel %vm36, %v19, 0
    %v41 = vsel %vm36, %v20, 0
    %v44 = vsel %vm36, %v21, 0
    %v47 = vsel %vm36, %v22, 0
    %v50 = vsel %vm36, %v23, 0
    %v53 = vsel %vm36, %v24, 0
    %v56 = vsel %vm36, %v25, 0
    %v59 = vsel %vm36, %v26, 0
    %v62 = vsel %vm36, %v27, 0
    %v65 = vsel %vm36, %v28, 0
    %v68 = vsel %vm36, %v29, 0
    %v71 = vsel %vm36, %v30, 0
    %v74 = vsel %vm36, %v31, 0
    %v77 = vsel %vm36, %v32, 0
    %v80 = vsel %vm36, %v33, 0
    %v83 = vsel %vm36, %v34, 0
    %vm85 = vcmask 1042432
    %v87 = vsel %vm85, %v35, 0
    %89 = vmatprep.subr.mxu0 0.0
    %90 = vmatpush1.msra.mxu0 %v87
    %91 = vmatprep.subr.mxu0 0.0
    %92 = vmatpush1.msra.mxu0 0.0
    %93 = vmatprep.subr.mxu0 0.0
    %94 = vmatpush1.msra.mxu0 0.0
    %95 = vmatprep.subr.mxu0 0.0
    %96 = vmatpush1.msra.mxu0 0.0
    %97 = vmatprep.subr.mxu0 0.0
    %98 = vmatpush1.msra.mxu0 0.0
    %99 = vmatprep.subr.mxu0 0.0
    %100 = vmatpush1.msra.mxu0 0.0
    %101 = vmatprep.subr.mxu0 0.0
    %102 = vmatpush1.msra.mxu0 0.0
    %103 = vmatprep.subr.mxu0 0.0
    %104 = vmatpush1.msra.mxu0 0.0
    %105 = vmatprep.subr.mxu0 0.0
    %106 = vmatpush1.msra.mxu0 0.0
    %107 = vmatprep.subr.mxu0 0.0
    %108 = vmatpush1.msra.mxu0 0.0
    %109 = vmatprep.subr.mxu0 0.0
    %110 = vmatpush1.msra.mxu0 0.0
    %111 = vmatprep.subr.mxu0 0.0
    %112 = vmatpush1.msra.mxu0 0.0
    %113 = vmatprep.subr.mxu0 0.0
    %114 = vmatpush1.msra.mxu0 0.0
    %115 = vmatprep.subr.mxu0 0.0
    %116 = vmatpush1.msra.mxu0 0.0
    %117 = vmatprep.subr.mxu0 0.0
    %118 = vmatpush1.msra.mxu0 0.0
    %119 = vmatprep.subr.mxu0 0.0
    %120 = vmatpush1.msra.mxu0 0.0
    %121 = vmatprep.subr.mxu0 0.0
    %122 = vmatpush1.msra.mxu0 0.0
    %123 = vmatprep.subr.mxu0 0.0
    %124 = vmatpush1.msra.mxu0 0.0
    %125 = vmatprep.subr.mxu0 0.0
    %126 = vmatpush1.msra.mxu0 0.0
    %127 = vmatprep.subr.mxu0 0.0
    %128 = vmatpush1.msra.mxu0 0.0
    %129 = vmatprep.subr.mxu0 0.0
    %130 = vmatpush1.msra.mxu0 0.0
    %131 = vmatprep.subr.mxu0 0.0
    %132 = vmatpush1.msra.mxu0 0.0
    %133 = vmatprep.subr.mxu0 0.0
    %134 = vmatpush1.msra.mxu0 0.0
    %135 = vmatprep.subr.mxu0 0.0
    %136 = vmatpush1.msra.mxu0 0.0
    %137 = vmatprep.subr.mxu0 0.0
    %138 = vmatpush1.msra.mxu0 0.0
    %139 = vmatprep.subr.mxu0 0.0
    %140 = vmatpush1.msra.mxu0 0.0
    %141 = vmatprep.subr.mxu0 0.0
    %142 = vmatpush1.msra.mxu0 0.0
    %143 = vmatprep.subr.mxu0 0.0
    %144 = vmatpush1.msra.mxu0 0.0
    %145 = vmatprep.subr.mxu0 0.0
    %146 = vmatpush1.msra.mxu0 0.0
    %147 = vmatprep.subr.mxu0 0.0
    %148 = vmatpush1.msra.mxu0 0.0
    %149 = vmatprep.subr.mxu0 0.0
    %150 = vmatpush1.msra.mxu0 0.0
    %151 = vmatprep.subr.mxu0 0.0
    %152 = vmatpush1.msra.mxu0 0.0
    %153 = vmatprep.mubr.f32.mxu0 0.0
    %154 = vmatmul.mubr.f32.gmra.mrb[0].mxu0 %v38
    %v155 = vpop.f32.mrb[0].mxu0
    %v156 = vadd.f32 0.0, %v155
    %v157 = vpop.f32.mrb[0].mxu0
    %158 = vmatprep.mubr.f32.mxu0 0.0
    %159 = vmatmul.mubr.f32.gmra.mrb[0].mxu0 %v41
    %v160 = vpop.f32.mrb[0].mxu0
    %v161 = vadd.f32 0.0, %v160
    %v162 = vpop.f32.mrb[0].mxu0
    %163 = vmatprep.mubr.f32.mxu0 0.0
    %164 = vmatmul.mubr.f32.gmra.mrb[0].mxu0 %v44
    %v165 = vpop.f32.mrb[0].mxu0
    %v166 = vadd.f32 0.0, %v165
    %v167 = vpop.f32.mrb[0].mxu0
    %168 = vmatprep.mubr.f32.mxu0 0.0
    %169 = vmatmul.mubr.f32.gmra.mrb[0].mxu0 %v47
    %v170 = vpop.f32.mrb[0].mxu0
    %v171 = vadd.f32 0.0, %v170
    %v172 = vpop.f32.mrb[0].mxu0
    %173 = vmatprep.mubr.f32.mxu0 0.0
    %174 = vmatmul.mubr.f32.gmra.mrb[0].mxu0 %v50
    %v175 = vpop.f32.mrb[0].mxu0
    %v176 = vadd.f32 0.0, %v175
    %v177 = vpop.f32.mrb[0].mxu0
    %178 = vmatprep.mubr.f32.mxu0 0.0
    %179 = vmatmul.mubr.f32.gmra.mrb[0].mxu0 %v53
    %v180 = vpop.f32.mrb[0].mxu0
    %v181 = vadd.f32 0.0, %v180
    %v182 = vpop.f32.mrb[0].mxu0
    %183 = vmatprep.mubr.f32.mxu0 0.0
    %184 = vmatmul.mubr.f32.gmra.mrb[0].mxu0 %v56
    %v185 = vpop.f32.mrb[0].mxu0
    %v186 = vadd.f32 0.0, %v185
    %v187 = vpop.f32.mrb[0].mxu0
    %188 = vmatprep.mubr.f32.mxu0 0.0
    %189 = vmatmul.mubr.f32.gmra.mrb[0].mxu0 %v59
    %v190 = vpop.f32.mrb[0].mxu0
    %v191 = vadd.f32 0.0, %v190
    %v192 = vpop.f32.mrb[0].mxu0
    %193 = vmatprep.mubr.f32.mxu0 0.0
    %194 = vmatmul.mubr.f32.gmra.mrb[0].mxu0 %v62
    %v195 = vpop.f32.mrb[0].mxu0
    %v196 = vadd.f32 0.0, %v195
    %v197 = vpop.f32.mrb[0].mxu0
    %198 = vmatprep.mubr.f32.mxu0 0.0
    %199 = vmatmul.mubr.f32.gmra.mrb[0].mxu0 %v65
    %v200 = vpop.f32.mrb[0].mxu0
    %v201 = vadd.f32 0.0, %v200
    %v202 = vpop.f32.mrb[0].mxu0
    %203 = vmatprep.mubr.f32.mxu0 0.0
    %204 = vmatmul.mubr.f32.gmra.mrb[0].mxu0 %v68
    %v205 = vpop.f32.mrb[0].mxu0
    %v206 = vadd.f32 0.0, %v205
    %v207 = vpop.f32.mrb[0].mxu0
    %208 = vmatprep.mubr.f32.mxu0 0.0
    %209 = vmatmul.mubr.f32.gmra.mrb[0].mxu0 %v71
    %v210 = vpop.f32.mrb[0].mxu0
    %v211 = vadd.f32 0.0, %v210
    %v212 = vpop.f32.mrb[0].mxu0
    %213 = vmatprep.mubr.f32.mxu0 0.0
    %214 = vmatmul.mubr.f32.gmra.mrb[0].mxu0 %v74
    %v215 = vpop.f32.mrb[0].mxu0
    %v216 = vadd.f32 0.0, %v215
    %v217 = vpop.f32.mrb[0].mxu0
    %218 = vmatprep.mubr.f32.mxu0 0.0
    %219 = vmatmul.mubr.f32.gmra.mrb[0].mxu0 %v77
    %v220 = vpop.f32.mrb[0].mxu0
    %v221 = vadd.f32 0.0, %v220
    %v222 = vpop.f32.mrb[0].mxu0
    %223 = vmatprep.mubr.f32.mxu0 0.0
    %224 = vmatmul.mubr.f32.gmra.mrb[0].mxu0 %v80
    %v225 = vpop.f32.mrb[0].mxu0
    %v226 = vadd.f32 0.0, %v225
    %v227 = vpop.f32.mrb[0].mxu0
    %228 = vmatprep.mubr.f32.mxu0 0.0
    %229 = vmatmul.mubr.f32.gmra.mrb[0].mxu0 %v83
    %v230 = vpop.f32.mrb[0].mxu0
    %v231 = vadd.f32 0.0, %v230
    %v232 = vpop.f32.mrb[0].mxu0
    %233 = vdwg.mxu0
    %v234 = vmax.f32 %v156, 0.0
    %v235 = vmax.f32 %v161, 0.0
    %v236 = vmax.f32 %v166, 0.0
    %v237 = vmax.f32 %v171, 0.0
    %v238 = vmax.f32 %v176, 0.0
    %v239 = vmax.f32 %v181, 0.0
    %v240 = vmax.f32 %v186, 0.0
    %v241 = vmax.f32 %v191, 0.0
    %v242 = vmax.f32 %v196, 0.0
    %v243 = vmax.f32 %v201, 0.0
    %v244 = vmax.f32 %v206, 0.0
    %v245 = vmax.f32 %v211, 0.0
    %v246 = vmax.f32 %v216, 0.0
    %v247 = vmax.f32 %v221, 0.0
    %v248 = vmax.f32 %v226, 0.0
    %v249 = vmax.f32 %v231, 0.0
    %v250 = vld [vmem:[%s2] sm:$0x1]
    %s251 = sld [smem:[#allocation2]]
    %v252 = vstv %s251
    %253 = vmatprep.subr.mxu0 0.0
    %254 = vmatpush1.msra.mxu0 %v234
    %255 = vmatprep.subr.mxu0 0.0
    %256 = vmatpush1.msra.mxu0 %v235
    %257 = vmatprep.subr.mxu0 0.0
    %258 = vmatpush1.msra.mxu0 %v236
    %259 = vmatprep.subr.mxu0 0.0
    %260 = vmatpush1.msra.mxu0 %v237
    %261 = vmatprep.subr.mxu0 0.0
    %262 = vmatpush1.msra.mxu0 %v238
    %263 = vmatprep.subr.mxu0 0.0
    %264 = vmatpush1.msra.mxu0 %v239
    %265 = vmatprep.subr.mxu0 0.0
    %266 = vmatpush1.msra.mxu0 %v240
    %267 = vmatprep.subr.mxu0 0.0
    %268 = vmatpush1.msra.mxu0 %v241
    %269 = vmatprep.subr.mxu0 0.0
    %270 = vmatpush1.msra.mxu0 %v242
    %271 = vmatprep.subr.mxu0 0.0
    %272 = vmatpush1.msra.mxu0 %v243
    %273 = vmatprep.subr.mxu0 0.0
    %274 = vmatpush1.msra.mxu0 %v244
    %275 = vmatprep.subr.mxu0 0.0
    %276 = vmatpush1.msra.mxu0 %v245
    %277 = vmatprep.subr.mxu0 0.0
    %278 = vmatpush1.msra.mxu0 %v246
    %279 = vmatprep.subr.mxu0 0.0
    %280 = vmatpush1.msra.mxu0 %v247
    %281 = vmatprep.subr.mxu0 0.0
    %282 = vmatpush1.msra.mxu0 %v248
    %283 = vmatprep.subr.mxu0 0.0
    %284 = vmatpush1.msra.mxu0 %v249
    %285 = vmatprep.subr.mxu0 0.0
    %286 = vmatpush1.msra.mxu0 0.0
    %287 = vmatprep.subr.mxu0 0.0
    %288 = vmatpush1.msra.mxu0 0.0
    %289 = vmatprep.subr.mxu0 0.0
    %290 = vmatpush1.msra.mxu0 0.0
    %291 = vmatprep.subr.mxu0 0.0
    %292 = vmatpush1.msra.mxu0 0.0
    %293 = vmatprep.subr.mxu0 0.0
    %294 = vmatpush1.msra.mxu0 0.0
    %295 = vmatprep.subr.mxu0 0.0
    %296 = vmatpush1.msra.mxu0 0.0
    %297 = vmatprep.subr.mxu0 0.0
    %298 = vmatpush1.msra.mxu0 0.0
    %299 = vmatprep.subr.mxu0 0.0
    %300 = vmatpush1.msra.mxu0 0.0
    %301 = vmatprep.subr.mxu0 0.0
    %302 = vmatpush1.msra.mxu0 0.0
    %303 = vmatprep.subr.mxu0 0.0
    %304 = vmatpush1.msra.mxu0 0.0
    %305 = vmatprep.subr.mxu0 0.0
    %306 = vmatpush1.msra.mxu0 0.0
    %307 = vmatprep.subr.mxu0 0.0
    %308 = vmatpush1.msra.mxu0 0.0
    %309 = vmatprep.subr.mxu0 0.0
    %310 = vmatpush1.msra.mxu0 0.0
    %311 = vmatprep.subr.mxu0 0.0
    %312 = vmatpush1.msra.mxu0 0.0
    %313 = vmatprep.subr.mxu0 0.0
    %314 = vmatpush1.msra.mxu0 0.0
    %315 = vmatprep.subr.mxu0 0.0
    %316 = vmatpush1.msra.mxu0 0.0
    %317 = vmatprep.mubr.f32.mxu0 0.0
    %318 = vmatmul.mubr.f32.gmra.mrb[0].mxu0 %v250
    %v319 = vpop.f32.mrb[0].mxu0
    %v320 = vadd.f32 %v252, %v319
    %v321 = vpop.f32.mrb[0].mxu0
    %322 = vdwg.mxu0
    %323 = vst [vmem:[#allocation3] sm:$0x1] %v320
    // Predicated region
    $region18: #{tpu_custom_call.1} parent=1 // pred_check
      _
    $region19: #{tpu_custom_call.1} parent=1 // pred_check_branch
      %325 = sbr.rel (0) target = $region21
    $region20: #{tpu_custom_call.1} parent=1 // pred_region
      %s327 = ssub.s32 16, 16
      %328 = vsyncadd [#allocation4], %s327
      %s330 = sshll.u32 [#allocation3], 4
      %s331 = int_to_ptr.vmem [resolvable:$true] %s330
      %333 = dma.vmem_to_hbm [thread:$0]  %s331, 16, %s4, [#allocation4]
    $region21: #{tpu_custom_call.1} parent=1 // pred_fallthru
      _
    // Predicated region
    $region22: #{tpu_custom_call.1} parent=1 // pred_check
      _
    $region23: #{tpu_custom_call.1} parent=1 // pred_check_branch
      %335 = sbr.rel (0) target = $region25
    $region24: #{tpu_custom_call.1} parent=1 // pred_region
      %336 = dma.done [#allocation4], 16
    $region25: #{tpu_custom_call.1} parent=1 // pred_fallthru
      _
    %337 = vsyncpa [#allocation4], 1

</llo_original>
